<compile_context>
chip_gen: v5e
topology: v5e:2x2
jax: 0.10.0
libtpu: 0.0.40
codegen_flags: <defaults>
</compile_context>

<pallas_src>
import functools

import jax
import jax.numpy as jnp
from jax.experimental import pallas as pl
from jax.experimental.pallas import tpu as pltpu


def _layer_norm(x, gamma, beta, eps=1e-5):
    mu = jnp.mean(x, axis=-1, keepdims=True)
    var = jnp.mean(jnp.square(x - mu), axis=-1, keepdims=True)
    return (x - mu) * jax.lax.rsqrt(var + eps) * gamma + beta


def _make_kernel(out_dim: int):
    def gcn_kernel(a_ref, acls_ref, x_ref, w1_ref, p1_ref, w2_ref, p2_ref,
                   w3_ref, b3_ref, out_ref):
        mm_dt = w1_ref.dtype
        A = a_ref[...]                                   # (TBN, TBN) block-diag

        # ---- gcn1: relu(LN(A @ (X @ W1) + b1)) on all rows ----
        xw = jnp.dot(x_ref[...], w1_ref[...],
                     preferred_element_type=jnp.float32)          # (TBN, H)
        h = jnp.dot(A, xw.astype(mm_dt),
                    preferred_element_type=jnp.float32)           # (TBN, H)
        h = h + p1_ref[0:1, :]
        h = _layer_norm(h, p1_ref[1:2, :], p1_ref[2:3, :])
        h = jnp.maximum(h, 0.0)
        # dropout is identity at inference time
        # TODO(synk): training-mode dropout (stateful RNG) intentionally omitted.

        # ---- gcn2 restricted to the CLS rows ----
        # Everything downstream of the aggregation (bias, LN, relu, linear,
        # log-softmax) is row-wise, and only the CLS row is pooled, so we only
        # aggregate the CLS row of every graph via A_cls.
        hw = jnp.dot(h.astype(mm_dt), w2_ref[...],
                     preferred_element_type=jnp.float32)          # (TBN, H2)
        c = jnp.dot(acls_ref[...], hw.astype(mm_dt),
                    preferred_element_type=jnp.float32)           # (TB, H2)
        c = c + p2_ref[0:1, :]
        c = _layer_norm(c, p2_ref[1:2, :], p2_ref[2:3, :])
        c = jnp.maximum(c, 0.0)

        # ---- final linear on the CLS rows, lane-dense padded output ----
        logits = jnp.dot(c.astype(mm_dt), w3_ref[...],
                         preferred_element_type=jnp.float32) + b3_ref[...]
        # padded lanes carry a -1e30 (float32) bias -> exp() underflows to 0,
        # so the log-softmax over the lane-padded slab equals the true one.
        if out_dim > 1:
            m = jnp.max(logits, axis=-1, keepdims=True)
            z = logits - m
            logits = z - jnp.log(jnp.sum(jnp.exp(z), axis=-1, keepdims=True))

        out_ref[...] = logits                                     # (TB, OUT_PAD)

    return gcn_kernel


@functools.partial(jax.jit, static_argnames=("use_bf16",))
def overall_gcn_forward(vvgs, token_embs, params, *, use_bf16=True):
    """vvgs: (B,N,N) f32, token_embs: (B,N,Din) f32. Returns (B, out_dim) f32."""
    B, N, _ = vvgs.shape
    Din = token_embs.shape[-1]
    (w1, b1, g1, be1, w2, b2, g2, be2, w3, b3) = params
    H, H2, out_dim = w1.shape[1], w2.shape[1], w3.shape[1]

    # --- lane-dense output: pad the final projection to a multiple of 128 ---
    OUT_PAD = ((out_dim + 127) // 128) * 128
    w3p = jnp.zeros((H2, OUT_PAD), w3.dtype).at[:, :out_dim].set(w3)
    b3p = jnp.full((1, OUT_PAD), -1e30, jnp.float32).at[:, :out_dim].set(b3)

    # --- fold per-layer vectors into one block each: rows = (bias, gamma, beta)
    p1 = jnp.concatenate([b1, g1, be1], axis=0)    # (3, H)  float32
    p2 = jnp.concatenate([b2, g2, be2], axis=0)    # (3, H2) float32

    mm_dtype = jnp.bfloat16 if use_bf16 else jnp.float32
    w1c = w1.astype(mm_dtype)
    w2c = w2.astype(mm_dtype)
    w3c = w3p.astype(mm_dtype)

    # --- batch blocking: ~512 rows (TB*N) per grid step; TB multiple of 8 when
    #     it tiles B; for B >= 16 cap so nblk >= 2 (v7x uses both TensorCores).
    ROWS_TARGET = 512
    tb_target = max(8, ((-(-ROWS_TARGET // N)) + 7) // 8 * 8)
    TB = min(B, tb_target)
    if B >= 16:
        TB = min(TB, ((-(-B // 2)) + 7) // 8 * 8)
    nblk = -(-B // TB)
    B_pad = nblk * TB
    TBN = TB * N

    # --- padded + flattened X and block-diagonal adjacency (one fused pass).
    #     Padded graphs are all-zero; their LayerNorm runs on constant vectors
    #     (eps keeps it finite) and the rows are sliced off at the end.
    X_in = jnp.zeros((B_pad * N, Din), mm_dtype).at[:B * N].set(
        token_embs.reshape(B * N, Din).astype(mm_dtype))
    A_pad = jnp.zeros((B_pad, N, N), mm_dtype).at[:B].set(vvgs.astype(mm_dtype))
    A4 = A_pad.reshape(nblk, TB, N, N)
    eye = jnp.eye(TB, dtype=mm_dtype)
    # Full block-diagonal adjacency: one (TBN,TBN)@(TBN,H) MXU matmul per layer.
    A_bd = (A4[:, :, :, None, :] * eye[None, :, None, :, None]
            ).reshape(nblk * TBN, TBN)
    # CLS rows of the block-diagonal adjacency (layer-2 aggregation output is
    # only needed at the CLS row of every graph).
    A_cls = (A4[:, :, 0, None, :] * eye[None, :, :, None]
             ).reshape(nblk * TB, TBN)

    const = lambda shape: pl.BlockSpec(shape, lambda b: (0, 0))

    out = pl.pallas_call(
        _make_kernel(out_dim),
        out_shape=jax.ShapeDtypeStruct((B_pad, OUT_PAD), jnp.float32),
        grid_spec=pltpu.PrefetchScalarGridSpec(
            num_scalar_prefetch=0,
            grid=(nblk,),
            in_specs=[
                pl.BlockSpec((TBN, TBN), lambda b: (b, 0)),   # A_bd
                pl.BlockSpec((TB, TBN), lambda b: (b, 0)),    # A_cls
                pl.BlockSpec((TBN, Din), lambda b: (b, 0)),   # X (flattened)
                const((Din, H)),
                const((3, H)),
                const((H, H2)),
                const((3, H2)),
                const((H2, OUT_PAD)),
                const((1, OUT_PAD)),
            ],
            out_specs=pl.BlockSpec((TB, OUT_PAD), lambda b: (b, 0)),
        ),
        compiler_params=pltpu.CompilerParams(
            dimension_semantics=("parallel",),
            vmem_limit_bytes=32 * 1024 * 1024),
    )(A_bd, A_cls, X_in, w1c, p1, w2c, p2, w3c, b3p)
    return out[:B, :out_dim]


def init_params(key, in_dim, hidden_dim, out_dim):
    h2 = hidden_dim // 2
    ks = jax.random.split(key, 6)
    # kaiming-uniform-ish deterministic init; layouts are (in, out)
    w1 = jax.random.uniform(ks[0], (in_dim, hidden_dim), jnp.float32, -1, 1) * (6.0 / in_dim) ** 0.5
    b1 = jax.random.uniform(ks[1], (1, hidden_dim), jnp.float32, -1, 1) * (1.0 / in_dim) ** 0.5
    w2 = jax.random.uniform(ks[2], (hidden_dim, h2), jnp.float32, -1, 1) * (6.0 / hidden_dim) ** 0.5
    b2 = jax.random.uniform(ks[3], (1, h2), jnp.float32, -1, 1) * (1.0 / hidden_dim) ** 0.5
    w3 = jax.random.uniform(ks[4], (h2, out_dim), jnp.float32, -1, 1) * (6.0 / h2) ** 0.5
    b3 = jax.random.uniform(ks[5], (1, out_dim), jnp.float32, -1, 1) * (1.0 / h2) ** 0.5
    # LayerNorm params (PyTorch default: gamma=1, beta=0)
    g1 = jnp.ones((1, hidden_dim), jnp.float32)
    be1 = jnp.zeros((1, hidden_dim), jnp.float32)
    g2 = jnp.ones((1, h2), jnp.float32)
    be2 = jnp.zeros((1, h2), jnp.float32)
    return (w1, b1, g1, be1, w2, b2, g2, be2, w3, b3)


def reference_forward(vvgs, token_embs, params):
    hp = jax.lax.Precision.HIGHEST
    (w1, b1, g1, be1, w2, b2, g2, be2, w3, b3) = params
    h = jnp.matmul(vvgs, token_embs, precision=hp)
    h = jnp.matmul(h, w1, precision=hp) + b1
    h = _layer_norm(h, g1, be1)
    h = jax.nn.relu(h)
    h = jnp.matmul(vvgs, h, precision=hp)
    h = jnp.matmul(h, w2, precision=hp) + b2
    h = _layer_norm(h, g2, be2)
    h = jax.nn.relu(h)
    logits = jnp.matmul(h, w3, precision=hp) + b3
    cls = logits[..., 0, :]
    return jax.nn.log_softmax(cls, axis=-1) if w3.shape[1] > 1 else cls


if __name__ == "__main__":
    B, N = 2, 8            # batch, number of graph nodes (seq)
    in_dim, hidden_dim, out_dim = 32, 32, 4

    key = jax.random.PRNGKey(0)
    k_vvg, k_tok, k_par = jax.random.split(key, 3)
    vvgs = jax.random.uniform(k_vvg, (B, N, N), jnp.float32)
    token_embs = jax.random.normal(k_tok, (B, N, in_dim), jnp.float32)
    params = init_params(k_par, in_dim, hidden_dim, out_dim)

    out = overall_gcn_forward(vvgs, token_embs, params)   # bf16 MXU operands
    out = jax.block_until_ready(out)

    ref = reference_forward(vvgs, token_embs, params)
    assert out.shape == (B, out_dim)
    # bf16 matmul operands (f32 accumulation, f32 LN / softmax) vs f32 reference
    assert jnp.allclose(out, ref, atol=5e-2, rtol=5e-2), \
        f"max abs diff {jnp.max(jnp.abs(out - ref))}"

    print("KERNEL_OK")
</pallas_src>

<mosaic_0001>
module attributes {stable_mosaic.version = 11 : i64} {
  func.func @gcn_kernel(%arg0: i32, %arg1: memref<16x16xbf16, #tpu.memory_space<vmem>>, %arg2: memref<2x16xbf16, #tpu.memory_space<vmem>>, %arg3: memref<16x32xbf16, #tpu.memory_space<vmem>>, %arg4: memref<32x32xbf16, #tpu.memory_space<vmem>>, %arg5: memref<3x32xf32, #tpu.memory_space<vmem>>, %arg6: memref<32x16xbf16, #tpu.memory_space<vmem>>, %arg7: memref<3x16xf32, #tpu.memory_space<vmem>>, %arg8: memref<16x128xbf16, #tpu.memory_space<vmem>>, %arg9: memref<1x128xf32, #tpu.memory_space<vmem>>, %arg10: memref<2x128xf32, #tpu.memory_space<vmem>>) attributes {dimension_semantics = [#tpu.dimension_semantics<parallel>], iteration_bounds = array<i64: 1>, scalar_prefetch = 0 : i64, scratch_operands = 0 : i64, tpu.core_type = #tpu.core_type<tc>, window_params = [{transform_indices = @transform_0, window_bounds = array<i64: 16, 16>}, {transform_indices = @transform_1, window_bounds = array<i64: 2, 16>}, {transform_indices = @transform_2, window_bounds = array<i64: 16, 32>}, {pipeline_mode = #tpu.pipeline_mode<synchronous>, transform_indices = @transform_3, window_bounds = array<i64: 32, 32>}, {pipeline_mode = #tpu.pipeline_mode<synchronous>, transform_indices = @transform_4, window_bounds = array<i64: 3, 32>}, {pipeline_mode = #tpu.pipeline_mode<synchronous>, transform_indices = @transform_5, window_bounds = array<i64: 32, 16>}, {pipeline_mode = #tpu.pipeline_mode<synchronous>, transform_indices = @transform_6, window_bounds = array<i64: 3, 16>}, {pipeline_mode = #tpu.pipeline_mode<synchronous>, transform_indices = @transform_7, window_bounds = array<i64: 16, 128>}, {pipeline_mode = #tpu.pipeline_mode<synchronous>, transform_indices = @transform_8, window_bounds = array<i64: 1, 128>}, {transform_indices = @transform_9, window_bounds = array<i64: 2, 128>}]} {
    %c0 = arith.constant 0 : index
    %c0_0 = arith.constant 0 : index
    %0 = vector.load %arg1[%c0, %c0_0] : memref<16x16xbf16, #tpu.memory_space<vmem>>, vector<16x16xbf16>
    %c0_1 = arith.constant 0 : index
    %c0_2 = arith.constant 0 : index
    %1 = vector.load %arg3[%c0_1, %c0_2] : memref<16x32xbf16, #tpu.memory_space<vmem>>, vector<16x32xbf16>
    %c0_3 = arith.constant 0 : index
    %c0_4 = arith.constant 0 : index
    %2 = vector.load %arg4[%c0_3, %c0_4] : memref<32x32xbf16, #tpu.memory_space<vmem>>, vector<32x32xbf16>
    %cst = arith.constant dense<0.000000e+00> : vector<16x32xf32>
    %3 = tpu.matmul %1, %2, %cst {dimension_numbers = #tpu.dot_dimension_numbers<[1], [0], [0], [1], [0, 0, 1, 1], [], []>} : vector<16x32xbf16>, vector<32x32xbf16>, vector<16x32xf32> -> vector<16x32xf32>
    %4 = arith.truncf %3 : vector<16x32xf32> to vector<16x32xbf16>
    %cst_5 = arith.constant dense<0.000000e+00> : vector<16x32xf32>
    %5 = tpu.matmul %0, %4, %cst_5 {dimension_numbers = #tpu.dot_dimension_numbers<[1], [0], [0], [1], [0, 0, 1, 1], [], []>} : vector<16x16xbf16>, vector<16x32xbf16>, vector<16x32xf32> -> vector<16x32xf32>
    %c0_6 = arith.constant 0 : index
    %c0_7 = arith.constant 0 : index
    %6 = vector.load %arg5[%c0_6, %c0_7] : memref<3x32xf32, #tpu.memory_space<vmem>>, vector<1x32xf32>
    %7 = vector.broadcast %6 : vector<1x32xf32> to vector<16x32xf32>
    %8 = arith.addf %5, %7 : vector<16x32xf32>
    %c1 = arith.constant 1 : index
    %c0_8 = arith.constant 0 : index
    %9 = vector.load %arg5[%c1, %c0_8] : memref<3x32xf32, #tpu.memory_space<vmem>>, vector<1x32xf32>
    %c2 = arith.constant 2 : index
    %c0_9 = arith.constant 0 : index
    %10 = vector.load %arg5[%c2, %c0_9] : memref<3x32xf32, #tpu.memory_space<vmem>>, vector<1x32xf32>
    %cst_10 = arith.constant dense<0.000000e+00> : vector<16xf32>
    %11 = vector.multi_reduction <add>, %8, %cst_10 [1] : vector<16x32xf32> to vector<16xf32>
    %12 = vector.shape_cast %11 : vector<16xf32> to vector<16x1xf32>
    %cst_11 = arith.constant 3.200000e+01 : f32
    %13 = vector.broadcast %cst_11 : f32 to vector<16x1xf32>
    %14 = arith.divf %12, %13 : vector<16x1xf32>
    %15 = vector.broadcast %14 : vector<16x1xf32> to vector<16x32xf32>
    %16 = arith.subf %8, %15 : vector<16x32xf32>
    %17 = arith.mulf %16, %16 : vector<16x32xf32>
    %cst_12 = arith.constant dense<0.000000e+00> : vector<16xf32>
    %18 = vector.multi_reduction <add>, %17, %cst_12 [1] : vector<16x32xf32> to vector<16xf32>
    %19 = vector.shape_cast %18 : vector<16xf32> to vector<16x1xf32>
    %cst_13 = arith.constant 3.200000e+01 : f32
    %20 = vector.broadcast %cst_13 : f32 to vector<16x1xf32>
    %21 = arith.divf %19, %20 : vector<16x1xf32>
    %22 = vector.broadcast %14 : vector<16x1xf32> to vector<16x32xf32>
    %23 = arith.subf %8, %22 : vector<16x32xf32>
    %cst_14 = arith.constant 9.99999974E-6 : f32
    %24 = vector.broadcast %cst_14 : f32 to vector<16x1xf32>
    %25 = arith.addf %21, %24 : vector<16x1xf32>
    %26 = math.rsqrt %25 : vector<16x1xf32>
    %27 = vector.broadcast %26 : vector<16x1xf32> to vector<16x32xf32>
    %28 = arith.mulf %23, %27 : vector<16x32xf32>
    %29 = vector.broadcast %9 : vector<1x32xf32> to vector<16x32xf32>
    %30 = arith.mulf %28, %29 : vector<16x32xf32>
    %31 = vector.broadcast %10 : vector<1x32xf32> to vector<16x32xf32>
    %32 = arith.addf %30, %31 : vector<16x32xf32>
    %cst_15 = arith.constant 0.000000e+00 : f32
    %33 = vector.broadcast %cst_15 : f32 to vector<16x32xf32>
    %34 = arith.maximumf %32, %33 : vector<16x32xf32>
    %35 = arith.truncf %34 : vector<16x32xf32> to vector<16x32xbf16>
    %c0_16 = arith.constant 0 : index
    %c0_17 = arith.constant 0 : index
    %36 = vector.load %arg6[%c0_16, %c0_17] : memref<32x16xbf16, #tpu.memory_space<vmem>>, vector<32x16xbf16>
    %cst_18 = arith.constant dense<0.000000e+00> : vector<16x16xf32>
    %37 = tpu.matmul %35, %36, %cst_18 {dimension_numbers = #tpu.dot_dimension_numbers<[1], [0], [0], [1], [0, 0, 1, 1], [], []>} : vector<16x32xbf16>, vector<32x16xbf16>, vector<16x16xf32> -> vector<16x16xf32>
    %c0_19 = arith.constant 0 : index
    %c0_20 = arith.constant 0 : index
    %38 = vector.load %arg2[%c0_19, %c0_20] : memref<2x16xbf16, #tpu.memory_space<vmem>>, vector<2x16xbf16>
    %39 = arith.truncf %37 : vector<16x16xf32> to vector<16x16xbf16>
    %cst_21 = arith.constant dense<0.000000e+00> : vector<2x16xf32>
    %40 = tpu.matmul %38, %39, %cst_21 {dimension_numbers = #tpu.dot_dimension_numbers<[1], [0], [0], [1], [0, 0, 1, 1], [], []>} : vector<2x16xbf16>, vector<16x16xbf16>, vector<2x16xf32> -> vector<2x16xf32>
    %c0_22 = arith.constant 0 : index
    %c0_23 = arith.constant 0 : index
    %41 = vector.load %arg7[%c0_22, %c0_23] : memref<3x16xf32, #tpu.memory_space<vmem>>, vector<1x16xf32>
    %42 = vector.broadcast %41 : vector<1x16xf32> to vector<2x16xf32>
    %43 = arith.addf %40, %42 : vector<2x16xf32>
    %c1_24 = arith.constant 1 : index
    %c0_25 = arith.constant 0 : index
    %44 = vector.load %arg7[%c1_24, %c0_25] : memref<3x16xf32, #tpu.memory_space<vmem>>, vector<1x16xf32>
    %c2_26 = arith.constant 2 : index
    %c0_27 = arith.constant 0 : index
    %45 = vector.load %arg7[%c2_26, %c0_27] : memref<3x16xf32, #tpu.memory_space<vmem>>, vector<1x16xf32>
    %cst_28 = arith.constant dense<0.000000e+00> : vector<2xf32>
    %46 = vector.multi_reduction <add>, %43, %cst_28 [1] : vector<2x16xf32> to vector<2xf32>
    %47 = vector.shape_cast %46 : vector<2xf32> to vector<2x1xf32>
    %cst_29 = arith.constant 1.600000e+01 : f32
    %48 = vector.broadcast %cst_29 : f32 to vector<2x1xf32>
    %49 = arith.divf %47, %48 : vector<2x1xf32>
    %50 = vector.broadcast %49 : vector<2x1xf32> to vector<2x16xf32>
    %51 = arith.subf %43, %50 : vector<2x16xf32>
    %52 = arith.mulf %51, %51 : vector<2x16xf32>
    %cst_30 = arith.constant dense<0.000000e+00> : vector<2xf32>
    %53 = vector.multi_reduction <add>, %52, %cst_30 [1] : vector<2x16xf32> to vector<2xf32>
    %54 = vector.shape_cast %53 : vector<2xf32> to vector<2x1xf32>
    %cst_31 = arith.constant 1.600000e+01 : f32
    %55 = vector.broadcast %cst_31 : f32 to vector<2x1xf32>
    %56 = arith.divf %54, %55 : vector<2x1xf32>
    %57 = vector.broadcast %49 : vector<2x1xf32> to vector<2x16xf32>
    %58 = arith.subf %43, %57 : vector<2x16xf32>
    %cst_32 = arith.constant 9.99999974E-6 : f32
    %59 = vector.broadcast %cst_32 : f32 to vector<2x1xf32>
    %60 = arith.addf %56, %59 : vector<2x1xf32>
    %61 = math.rsqrt %60 : vector<2x1xf32>
    %62 = vector.broadcast %61 : vector<2x1xf32> to vector<2x16xf32>
    %63 = arith.mulf %58, %62 : vector<2x16xf32>
    %64 = vector.broadcast %44 : vector<1x16xf32> to vector<2x16xf32>
    %65 = arith.mulf %63, %64 : vector<2x16xf32>
    %66 = vector.broadcast %45 : vector<1x16xf32> to vector<2x16xf32>
    %67 = arith.addf %65, %66 : vector<2x16xf32>
    %cst_33 = arith.constant 0.000000e+00 : f32
    %68 = vector.broadcast %cst_33 : f32 to vector<2x16xf32>
    %69 = arith.maximumf %67, %68 : vector<2x16xf32>
    %70 = arith.truncf %69 : vector<2x16xf32> to vector<2x16xbf16>
    %c0_34 = arith.constant 0 : index
    %c0_35 = arith.constant 0 : index
    %71 = vector.load %arg8[%c0_34, %c0_35] : memref<16x128xbf16, #tpu.memory_space<vmem>>, vector<16x128xbf16>
    %cst_36 = arith.constant dense<0.000000e+00> : vector<2x128xf32>
    %72 = tpu.matmul %70, %71, %cst_36 {dimension_numbers = #tpu.dot_dimension_numbers<[1], [0], [0], [1], [0, 0, 1, 1], [], []>} : vector<2x16xbf16>, vector<16x128xbf16>, vector<2x128xf32> -> vector<2x128xf32>
    %c0_37 = arith.constant 0 : index
    %c0_38 = arith.constant 0 : index
    %73 = vector.load %arg9[%c0_37, %c0_38] : memref<1x128xf32, #tpu.memory_space<vmem>>, vector<1x128xf32>
    %74 = vector.broadcast %73 : vector<1x128xf32> to vector<2x128xf32>
    %75 = arith.addf %72, %74 : vector<2x128xf32>
    %cst_39 = arith.constant dense<0xFF800000> : vector<2xf32>
    %76 = vector.multi_reduction <maximumf>, %75, %cst_39 [1] : vector<2x128xf32> to vector<2xf32>
    %77 = vector.shape_cast %76 : vector<2xf32> to vector<2x1xf32>
    %78 = vector.broadcast %77 : vector<2x1xf32> to vector<2x128xf32>
    %79 = arith.subf %75, %78 : vector<2x128xf32>
    %80 = math.exp %79 : vector<2x128xf32>
    %cst_40 = arith.constant dense<0.000000e+00> : vector<2xf32>
    %81 = vector.multi_reduction <add>, %80, %cst_40 [1] : vector<2x128xf32> to vector<2xf32>
    %82 = vector.shape_cast %81 : vector<2xf32> to vector<2x1xf32>
    %83 = math.log %82 : vector<2x1xf32>
    %84 = vector.broadcast %83 : vector<2x1xf32> to vector<2x128xf32>
    %85 = arith.subf %79, %84 : vector<2x128xf32>
    %c0_41 = arith.constant 0 : index
    %c0_42 = arith.constant 0 : index
    %86 = vector.load %arg10[%c0_41, %c0_42] : memref<2x128xf32, #tpu.memory_space<vmem>>, vector<2x128xf32>
    tpu.vector_store %arg10[%c0_41, %c0_42], %85 {strides = array<i32>} : memref<2x128xf32, #tpu.memory_space<vmem>>, vector<2x128xf32>,
    return
  }
  func.func @transform_0(%arg0: i32) -> (i32, i32) {
    %c0_i32 = arith.constant 0 : i32
    %c0_i32_0 = arith.constant 0 : i32
    return %arg0, %c0_i32 : i32, i32
  }
  func.func @transform_1(%arg0: i32) -> (i32, i32) {
    %c0_i32 = arith.constant 0 : i32
    %c0_i32_0 = arith.constant 0 : i32
    return %arg0, %c0_i32 : i32, i32
  }
  func.func @transform_2(%arg0: i32) -> (i32, i32) {
    %c0_i32 = arith.constant 0 : i32
    %c0_i32_0 = arith.constant 0 : i32
    return %arg0, %c0_i32 : i32, i32
  }
  func.func @transform_3(%arg0: i32) -> (i32, i32) {
    %c0_i32 = arith.constant 0 : i32
    %c0_i32_0 = arith.constant 0 : i32
    %c0_i32_1 = arith.constant 0 : i32
    return %c0_i32, %c0_i32_0 : i32, i32
  }
  func.func @transform_4(%arg0: i32) -> (i32, i32) {
    %c0_i32 = arith.constant 0 : i32
    %c0_i32_0 = arith.constant 0 : i32
    %c0_i32_1 = arith.constant 0 : i32
    return %c0_i32, %c0_i32_0 : i32, i32
  }
  func.func @transform_5(%arg0: i32) -> (i32, i32) {
    %c0_i32 = arith.constant 0 : i32
    %c0_i32_0 = arith.constant 0 : i32
    %c0_i32_1 = arith.constant 0 : i32
    return %c0_i32, %c0_i32_0 : i32, i32
  }
  func.func @transform_6(%arg0: i32) -> (i32, i32) {
    %c0_i32 = arith.constant 0 : i32
    %c0_i32_0 = arith.constant 0 : i32
    %c0_i32_1 = arith.constant 0 : i32
    return %c0_i32, %c0_i32_0 : i32, i32
  }
  func.func @transform_7(%arg0: i32) -> (i32, i32) {
    %c0_i32 = arith.constant 0 : i32
    %c0_i32_0 = arith.constant 0 : i32
    %c0_i32_1 = arith.constant 0 : i32
    return %c0_i32, %c0_i32_0 : i32, i32
  }
  func.func @transform_8(%arg0: i32) -> (i32, i32) {
    %c0_i32 = arith.constant 0 : i32
    %c0_i32_0 = arith.constant 0 : i32
    %c0_i32_1 = arith.constant 0 : i32
    return %c0_i32, %c0_i32_0 : i32, i32
  }
  func.func @transform_9(%arg0: i32) -> (i32, i32) {
    %c0_i32 = arith.constant 0 : i32
    %c0_i32_0 = arith.constant 0 : i32
    return %arg0, %c0_i32 : i32, i32
  }
}

</mosaic_0001>

<llo_original>
// kernel: overall_gcn_forward.1
$region0: #{overall_gcn_forward.1}
  #allocation0 [shape = 'u32[]', space=smem, size = 0x4, offset = 0x4, fixed_abs, tag = 'smem constant byte address 0x4 - core index']
  #allocation1 [shape = 'u32[72,128]{1,0:T(1,128)}', space=vmem, size = 0x9000, scoped, tag = 'internal scratch']
  %s0 = inlined_call_operand.vmem [shape: bf16[16,16], index: 0, kind: input, shape index: {}]
  %s1 = inlined_call_operand.vmem [shape: bf16[2,16], index: 1, kind: input, shape index: {}]
  %s2 = inlined_call_operand.vmem [shape: bf16[16,32], index: 2, kind: input, shape index: {}]
  %s3 = inlined_call_operand.vmem [shape: bf16[32,32], index: 3, kind: input, shape index: {}]
  %s4 = inlined_call_operand.vmem [shape: f32[3,32], index: 4, kind: input, shape index: {}]
  %s5 = inlined_call_operand.vmem [shape: bf16[32,16], index: 5, kind: input, shape index: {}]
  %s6 = inlined_call_operand.vmem [shape: f32[3,16], index: 6, kind: input, shape index: {}]
  %s7 = inlined_call_operand.vmem [shape: bf16[16,128], index: 7, kind: input, shape index: {}]
  %s8 = inlined_call_operand.vmem [shape: f32[1,128], index: 8, kind: input, shape index: {}]
  %s9 = inlined_call_operand.hbm [shape: f32[2,128], index: 9, kind: output, shape index: {}]
  %s10 = sld [smem:[#allocation0]]
  $region46: #{overall_gcn_forward.1} parent=0
    _
  %s12 = ssub.s32 1, %s10
  %s13 = scalar_select 0, %s12, %s10
  $region1: #{overall_gcn_forward.1} parent=0
    #allocation2 [shape = 'u8[1024]{0}', space=vmem, size = 0x400, scoped, tag = 'output window, operand 0, single buffered']
    #allocation3 [shape = 's32[1]{0}', space=sflag, size = 0x4, scoped, tag = 'scoped memory for overall_gcn_forward.1']
    %14 = vsyncpa [#allocation3], 0
    // Predicated region
    $region2: #{overall_gcn_forward.1} parent=1 // pred_check
      _
    $region3: #{overall_gcn_forward.1} parent=1 // pred_check_branch
      %16 = sbr.rel (0) target = $region5
    $region4: #{overall_gcn_forward.1} parent=1 // pred_region
      _
    $region5: #{overall_gcn_forward.1} parent=1 // pred_fallthru
      _
    // Predicated region
    $region6: #{overall_gcn_forward.1} parent=1 // pred_check
      _
    $region7: #{overall_gcn_forward.1} parent=1 // pred_check_branch
      %18 = sbr.rel (0) target = $region9
    $region8: #{overall_gcn_forward.1} parent=1 // pred_region
      _
    $region9: #{overall_gcn_forward.1} parent=1 // pred_fallthru
      _
    // Predicated region
    $region10: #{overall_gcn_forward.1} parent=1 // pred_check
      _
    $region11: #{overall_gcn_forward.1} parent=1 // pred_check_branch
      %20 = sbr.rel (0) target = $region13
    $region12: #{overall_gcn_forward.1} parent=1 // pred_region
      _
    $region13: #{overall_gcn_forward.1} parent=1 // pred_fallthru
      _
    // Predicated region
    $region14: #{overall_gcn_forward.1} parent=1 // pred_check
      _
    $region15: #{overall_gcn_forward.1} parent=1 // pred_check_branch
      %22 = sbr.rel (0) target = $region17
    $region16: #{overall_gcn_forward.1} parent=1 // pred_region
      _
    $region17: #{overall_gcn_forward.1} parent=1 // pred_fallthru
      _
    // Predicated region
    $region18: #{overall_gcn_forward.1} parent=1 // pred_check
      _
    $region19: #{overall_gcn_forward.1} parent=1 // pred_check_branch
      %24 = sbr.rel (0) target = $region21
    $region20: #{overall_gcn_forward.1} parent=1 // pred_region
      _
    $region21: #{overall_gcn_forward.1} parent=1 // pred_fallthru
      _
    // Predicated region
    $region22: #{overall_gcn_forward.1} parent=1 // pred_check
      _
    $region23: #{overall_gcn_forward.1} parent=1 // pred_check_branch
      %26 = sbr.rel (0) target = $region25
    $region24: #{overall_gcn_forward.1} parent=1 // pred_region
      _
    $region25: #{overall_gcn_forward.1} parent=1 // pred_fallthru
      _
    // Predicated region
    $region26: #{overall_gcn_forward.1} parent=1 // pred_check
      _
    $region27: #{overall_gcn_forward.1} parent=1 // pred_check_branch
      %28 = sbr.rel (0) target = $region29
    $region28: #{overall_gcn_forward.1} parent=1 // pred_region
      _
    $region29: #{overall_gcn_forward.1} parent=1 // pred_fallthru
      _
    // Predicated region
    $region30: #{overall_gcn_forward.1} parent=1 // pred_check
      _
    $region31: #{overall_gcn_forward.1} parent=1 // pred_check_branch
      %30 = sbr.rel (0) target = $region33
    $region32: #{overall_gcn_forward.1} parent=1 // pred_region
      _
    $region33: #{overall_gcn_forward.1} parent=1 // pred_fallthru
      _
    // Predicated region
    $region34: #{overall_gcn_forward.1} parent=1 // pred_check
      _
    $region35: #{overall_gcn_forward.1} parent=1 // pred_check_branch
      %32 = sbr.rel (0) target = $region37
    $region36: #{overall_gcn_forward.1} parent=1 // pred_region
      _
    $region37: #{overall_gcn_forward.1} parent=1 // pred_fallthru
      _
    %v34 = vld [vmem:[%s0] sm:$0xf]
    %v35 = vld [vmem:[%s0 + $0x4] sm:$0xf]
    %v36 = vld [vmem:[%s2] sm:$0xf]
    %v37 = vld [vmem:[%s2 + $0x4] sm:$0xf]
    %v38 = vld [vmem:[%s3] sm:$0xf]
    %v39 = vld [vmem:[%s3 + $0x4] sm:$0xf]
    %v40 = vld [vmem:[%s3 + $0x8] sm:$0xf]
    %v41 = vld [vmem:[%s3 + $0xc] sm:$0xf]
    %v44 = vunpack.c.l.b16 %v36
    %v45 = vunpack.c.l.b16 %v37
    %v46 = vpack.c.b16 %v45, %v44
    %v51 = vunpack.c.l.b16 %v38
    %v52 = vunpack.c.l.b16 %v39
    %v53 = vunpack.c.l.b16 %v40
    %v54 = vunpack.c.l.b16 %v41
    %v55 = vpack.c.b16 %v52, %v51
    %v56 = vpack.c.b16 %v54, %v53
    %vm59 = vcmask 261120
    %v61 = vsel %vm59, %v46, 0
    %63 = vmatpush.bf16.msra.mxu0 0
    %64 = vmatpush.bf16.msra.mxu0 0
    %65 = vmatpush.bf16.msra.mxu0 0
    %66 = vmatpush.bf16.msra.mxu0 0
    %67 = vmatpush.bf16.msra.mxu0 0
    %68 = vmatpush.bf16.msra.mxu0 0
    %69 = vmatpush.bf16.msra.mxu0 %v56
    %70 = vmatpush.bf16.msra.mxu0 %v55
    %71 = vmatmul.bf16.gmra.mxu0 %v61
    %v72 = vpop.f32.mrf.mxu0
    %v73 = vadd.f32 0.0, %v72
    %v74 = vpop.f32.mrf.mxu0
    %v75 = vadd.f32 0.0, %v74
    %76 = vdwg.mxu0
    %v77 = vpack.c.bf16 %v75, %v73
    %v78 = vld [vmem:[%s4] sm:$0x1]
    %v79 = vperm.slane %v78, 0
    %v82 = vunpack.c.l.b16 %v34
    %v83 = vunpack.c.l.b16 %v35
    %v84 = vpack.c.b16 %v83, %v82
    %vm85 = vcmask 130048
    %v87 = vsel %vm85, %v84, 0
    %89 = vmatpush.bf16.msra.mxu0 0
    %90 = vmatpush.bf16.msra.mxu0 0
    %91 = vmatpush.bf16.msra.mxu0 0
    %92 = vmatpush.bf16.msra.mxu0 0
    %93 = vmatpush.bf16.msra.mxu0 0
    %94 = vmatpush.bf16.msra.mxu0 0
    %95 = vmatpush.bf16.msra.mxu0 0
    %96 = vmatpush.bf16.msra.mxu0 %v77
    %97 = vmatmul.bf16.gmra.mxu0 %v87
    %v98 = vpop.f32.mrf.mxu0
    %v99 = vadd.f32 %v79, %v98
    %v100 = vpop.f32.mrf.mxu0
    %v101 = vadd.f32 %v79, %v100
    %102 = vdwg.mxu0
    %v103 = vld [vmem:[%s4 + $0x1] sm:$0x1]
    %v104 = vld [vmem:[%s4 + $0x2] sm:$0x1]
    %v105 = vsel %vm59, %v99, 0.0
    %106 = vadd.xlane.f32.xlu0 %v105
    %v107 = vpop.xlane.xlu0 %106
    %v108 = vsel %vm59, %v101, 0.0
    %109 = vadd.xlane.f32.xlu0 %v108
    %v110 = vpop.xlane.xlu0 %109
    %v111 = vrcp.pop 32.0
    %v112 = vmul.f32 32.0, %v111
    %v113 = vsub.f32 1.0, %v112
    %v114 = vmul.f32 %v111, %v113
    %v115 = vadd.f32 %v111, %v114
    %vm116 = vweird.f32 %v111
    %v117 = vsel %vm116, %v111, %v115
    %v118 = vmul.f32 %v107, %v117
    %v119 = vmul.f32 %v110, %v117
    %v120 = vsub.f32 %v99, %v118
    %v121 = vsub.f32 %v101, %v119
    %v122 = vmul.f32 %v120, %v120
    %v123 = vmul.f32 %v121, %v121
    %v124 = vsel %vm59, %v122, 0.0
    %125 = vadd.xlane.f32.xlu0 %v124
    %v126 = vpop.xlane.xlu0 %125
    %v127 = vsel %vm59, %v123, 0.0
    %128 = vadd.xlane.f32.xlu0 %v127
    %v129 = vpop.xlane.xlu0 %128
    %v130 = vmul.f32 %v126, %v117
    %v131 = vmul.f32 %v129, %v117
    %v132 = vadd.f32 %v130, 1e-05
    %v133 = vadd.f32 %v131, 1e-05
    %v134 = vrsqrt.pop %v132
    %v135 = vmul.f32 %v134, %v132
    %v136 = vmul.f32 %v135, %v134
    %v137 = vmul.f32 0.5, %v136
    %v138 = vsub.f32 1.5, %v137
    %v139 = vmul.f32 %v134, %v138
    %vm140 = vweird.f32 %v132
    %vm141 = vweird.f32 %v134
    %vm142 = vmor %vm140, %vm141
    %v143 = vsel %vm142, %v134, %v139
    %v144 = vrsqrt.pop %v133
    %v145 = vmul.f32 %v144, %v133
    %v146 = vmul.f32 %v145, %v144
    %v147 = vmul.f32 0.5, %v146
    %v148 = vsub.f32 1.5, %v147
    %v149 = vmul.f32 %v144, %v148
    %vm150 = vweird.f32 %v133
    %vm151 = vweird.f32 %v144
    %vm152 = vmor %vm150, %vm151
    %v153 = vsel %vm152, %v144, %v149
    %v154 = vmul.f32 %v120, %v143
    %v155 = vmul.f32 %v121, %v153
    %v156 = vperm.slane %v103, 0
    %v157 = vmul.f32 %v154, %v156
    %v158 = vmul.f32 %v155, %v156
    %v159 = vperm.slane %v104, 0
    %v160 = vadd.f32 %v157, %v159
    %v161 = vadd.f32 %v158, %v159
    %v162 = vmax.f32 %v160, 0.0
    %v163 = vmax.f32 %v161, 0.0
    %v164 = vpack.c.bf16 %v163, %v162
    %v165 = vld [vmem:[%s5] sm:$0xf]
    %v166 = vld [vmem:[%s5 + $0x4] sm:$0xf]
    %v167 = vld [vmem:[%s5 + $0x8] sm:$0xf]
    %v168 = vld [vmem:[%s5 + $0xc] sm:$0xf]
    %v173 = vunpack.c.l.b16 %v165
    %v174 = vunpack.c.l.b16 %v166
    %v175 = vunpack.c.l.b16 %v167
    %v176 = vunpack.c.l.b16 %v168
    %v177 = vpack.c.b16 %v174, %v173
    %v178 = vpack.c.b16 %v176, %v175
    %v182 = vsel %vm59, %v164, 0
    %184 = vmatpush.bf16.msra.mxu0 0
    %185 = vmatpush.bf16.msra.mxu0 0
    %186 = vmatpush.bf16.msra.mxu0 0
    %187 = vmatpush.bf16.msra.mxu0 0
    %188 = vmatpush.bf16.msra.mxu0 0
    %189 = vmatpush.bf16.msra.mxu0 0
    %190 = vmatpush.bf16.msra.mxu0 %v178
    %191 = vmatpush.bf16.msra.mxu0 %v177
    %192 = vmatmul.bf16.gmra.mxu0 %v182
    %v193 = vpop.f32.mrf.mxu0
    %v194 = vadd.f32 0.0, %v193
    %v195 = vpop.f32.mrf.mxu0
    %v196 = vadd.f32 0.0, %v195
    %197 = vdwg.mxu0
    %v198 = vld [vmem:[%s1] sm:$0x1]
    %v199 = vpack.c.bf16 %v196, %v194
    %v200 = vld [vmem:[%s6] sm:$0x1]
    %v201 = vperm.slane %v200, 0
    %v203 = vsel %vm85, %v198, 0
    %205 = vmatpush.bf16.msra.mxu0 0
    %206 = vmatpush.bf16.msra.mxu0 0
    %207 = vmatpush.bf16.msra.mxu0 0
    %208 = vmatpush.bf16.msra.mxu0 0
    %209 = vmatpush.bf16.msra.mxu0 0
    %210 = vmatpush.bf16.msra.mxu0 0
    %211 = vmatpush.bf16.msra.mxu0 0
    %212 = vmatpush.bf16.msra.mxu0 %v199
    %213 = vmatmul.bf16.gmra.mxu0 %v203
    %v214 = vpop.f32.mrf.mxu0
    %v215 = vadd.f32 %v201, %v214
    %v216 = vpop.f32.mrf.mxu0
    %217 = vdwg.mxu0
    %v218 = vld [vmem:[%s6 + $0x1] sm:$0x1]
    %v219 = vld [vmem:[%s6 + $0x2] sm:$0x1]
    %vm220 = vcmask 123904
    %v221 = vsel %vm220, %v215, 0.0
    %222 = vadd.xlane.f32.xlu0 %v221
    %v223 = vpop.xlane.xlu0 %222
    %v224 = vrcp.pop 16.0
    %v225 = vmul.f32 16.0, %v224
    %v226 = vsub.f32 1.0, %v225
    %v227 = vmul.f32 %v224, %v226
    %v228 = vadd.f32 %v224, %v227
    %vm229 = vweird.f32 %v224
    %v230 = vsel %vm229, %v224, %v228
    %v231 = vmul.f32 %v223, %v230
    %v232 = vsub.f32 %v215, %v231
    %v233 = vmul.f32 %v232, %v232
    %v234 = vsel %vm220, %v233, 0.0
    %235 = vadd.xlane.f32.xlu0 %v234
    %v236 = vpop.xlane.xlu0 %235
    %v237 = vmul.f32 %v236, %v230
    %v238 = vadd.f32 %v237, 1e-05
    %v239 = vrsqrt.pop %v238
    %v240 = vmul.f32 %v239, %v238
    %v241 = vmul.f32 %v240, %v239
    %v242 = vmul.f32 0.5, %v241
    %v243 = vsub.f32 1.5, %v242
    %v244 = vmul.f32 %v239, %v243
    %vm245 = vweird.f32 %v238
    %vm246 = vweird.f32 %v239
    %vm247 = vmor %vm245, %vm246
    %v248 = vsel %vm247, %v239, %v244
    %v249 = vmul.f32 %v232, %v248
    %v250 = vperm.slane %v218, 0
    %v251 = vmul.f32 %v249, %v250
    %v252 = vperm.slane %v219, 0
    %v253 = vadd.f32 %v251, %v252
    %v254 = vmax.f32 %v253, 0.0
    %v255 = vpack.c.bf16 %v254, %v254
    %v256 = vld [vmem:[%s7] sm:$0xf]
    %v257 = vld [vmem:[%s7 + $0x4] sm:$0xf]
    %v258 = vld [vmem:[%s8] sm:$0x1]
    %v260 = vperm.slane %v258, 0
    %v264 = vunpack.c.l.b16 %v256
    %v265 = vunpack.c.l.b16 %v257
    %v266 = vpack.c.b16 %v265, %v264
    %v269 = vsel %vm85, %v255, 0
    %271 = vmatpush.bf16.msra.mxu0 0
    %272 = vmatpush.bf16.msra.mxu0 0
    %273 = vmatpush.bf16.msra.mxu0 0
    %274 = vmatpush.bf16.msra.mxu0 0
    %275 = vmatpush.bf16.msra.mxu0 0
    %276 = vmatpush.bf16.msra.mxu0 0
    %277 = vmatpush.bf16.msra.mxu0 0
    %278 = vmatpush.bf16.msra.mxu0 %v266
    %279 = vmatmul.bf16.gmra.mxu0 %v269
    %v280 = vpop.f32.mrf.mxu0
    %v281 = vadd.f32 %v260, %v280
    %v282 = vpop.f32.mrf.mxu0
    %283 = vdwg.mxu0
    %vm284 = vcmask 1041408
    %v285 = vsel %vm284, %v281, -inf
    %286 = vmax.xlane.f32.xlu0 %v285
    %v287 = vpop.xlane.xlu0 %286
    %v288 = vsub.f32 %v281, %v287
    %v289 = vmul.f32 %v288, 1.442695
    %v290 = vpow.pop %v289
    %v291 = vsel %vm284, %v290, 0.0
    %292 = vadd.xlane.f32.xlu0 %v291
    %v293 = vpop.xlane.xlu0 %292
    %v294 = vlog2.pop %v293
    %v295 = vmul.f32 %v294, 0.6931472
    %v296 = vsub.f32 %v288, %v295
    %297 = vst [vmem:[#allocation2] sm:$0x3] %v296
    // Predicated region
    $region38: #{overall_gcn_forward.1} parent=1 // pred_check
      _
    $region39: #{overall_gcn_forward.1} parent=1 // pred_check_branch
      %299 = sbr.rel (0) target = $region41
    $region40: #{overall_gcn_forward.1} parent=1 // pred_region
      %301 = vsyncadd [#allocation3], 0
      %s303 = sshll.u32 [#allocation2], 4
      %s304 = int_to_ptr.vmem [resolvable:$true] %s303
      %s305 = sshll.u32 %s9, 4
      %s306 = int_to_ptr.hbm [resolvable:$true] %s305
      %308 = dma.vmem_to_hbm [thread:$0]  %s304, 32, %s306, [#allocation3]
    $region41: #{overall_gcn_forward.1} parent=1 // pred_fallthru
      _
    // Predicated region
    $region42: #{overall_gcn_forward.1} parent=1 // pred_check
      _
    $region43: #{overall_gcn_forward.1} parent=1 // pred_check_branch
      %310 = sbr.rel (0) target = $region45
    $region44: #{overall_gcn_forward.1} parent=1 // pred_region
      %312 = dma.done [#allocation3], 32
    $region45: #{overall_gcn_forward.1} parent=1 // pred_fallthru
      _
    %313 = vsyncpa [#allocation3], 1

</llo_original>
